<compile_context>
chip_gen: v5e
topology: v5e:2x2
jax: 0.10.0
libtpu: 0.0.40
codegen_flags: <defaults>
</compile_context>

<pallas_src>
import jax
import jax.numpy as jnp
from jax.experimental import pallas as pl
from jax.experimental.pallas import tpu as pltpu

KH = KW = 9
CIN = COUT = 3
SCALE = 16            # 1 / 0.0625
K = CIN * KH * KW     # 243
K_PAD = 256           # contraction dim padded to two lanes-of-128
C_PAD = 128           # output channels padded lane-dense
N = 2                 # batch; the pairwise softmax in the kernel hard-codes this


# ------- fused kernel: hardtanh + conv-as-matmul + bias + relu6 + softmax over batch -------
def fused_kernel(p_ref, w_ref, b_ref, o_ref):
    # p_ref: (128, 256) zero-padded im2col patches of the RAW (unclipped) input
    # w_ref: (256, 128) padded conv weights (rows >= 243 and cols >= 3 are zero)
    # b_ref: (1, 128)   padded bias
    # o_ref: (128, 128) padded output; only [:, :3] is meaningful
    p = jnp.clip(p_ref[...] + 3.0, -3.0, 0.0)          # hardtanh(x+3, -3, 0); keeps pad lanes 0
    y = jnp.dot(p, w_ref[...], preferred_element_type=jnp.float32)   # MXU, f32
    y = y + b_ref[...]                                  # bias broadcast over rows
    y = jnp.clip(y, 0.0, 6.0)                           # relu6
    # softmax over batch (dim 0 of the NCHW output).  Rows are (n, oh, ow) row-major with
    # N == 2, so batch pairs are rows (r, r + 64); 64 is sublane-aligned.
    half = y.shape[0] // 2
    y0, y1 = y[:half, :], y[half:, :]
    m = jnp.maximum(y0, y1)
    e0 = jnp.exp(y0 - m)
    e1 = jnp.exp(y1 - m)
    inv = 1.0 / (e0 + e1)
    o_ref[:half, :] = e0 * inv
    o_ref[half:, :] = e1 * inv


def fused_pallas(patches_p, w_p, b_p):
    M, KP = patches_p.shape
    _, CP = w_p.shape
    cost = pl.CostEstimate(
        flops=2 * M * KP * CP,
        transcendentals=M * CP + (M // 2) * CP,         # exps + pair reciprocals (advisory)
        bytes_accessed=4 * (M * KP + KP * CP + CP + M * CP),
    )
    vmem = pl.BlockSpec(memory_space=pltpu.MemorySpace.VMEM)
    return pl.pallas_call(
        fused_kernel,
        out_shape=jax.ShapeDtypeStruct((M, CP), jnp.float32),
        in_specs=[vmem, vmem, vmem],
        out_specs=vmem,
        cost_estimate=cost,
    )(patches_p, w_p, b_p)


# ---------------------------- one-time parameter packing ----------------------------
def pack_params(w, b):
    """Repack conv weights/bias into MXU-friendly padded tiles ONCE, outside the hot path."""
    w_mat = jnp.transpose(w.reshape(COUT, K))                     # (243, 3), rows = (ci, kh, kw)
    w_p = jnp.zeros((K_PAD, C_PAD), w.dtype).at[:K, :COUT].set(w_mat)
    b_p = jnp.zeros((1, C_PAD), b.dtype).at[0, :COUT].set(b)
    return w_p, b_p


# ---------------------------------- forward ----------------------------------
def model_forward(x, w_p, b_p):
    n, c, H, W = x.shape
    assert n == N and c == CIN, "kernel softmax pairing assumes N == 2, C == 3"

    # Fused downsample + im2col in ONE conv HLO: stride-16 window stride and 16x kernel
    # dilation reproduce exactly "nearest-downsample by 1/16 then 9x9 VALID conv".
    # NHWC output layout -> the following reshape is a pure row-major collapse (no relayout).
    # Feature-dim ordering is (c, kh, kw), matching the OIHW weight flattening in pack_params.
    patches = jax.lax.conv_general_dilated_patches(
        x, filter_shape=(KH, KW), window_strides=(SCALE, SCALE), padding="VALID",
        rhs_dilation=(SCALE, SCALE),
        dimension_numbers=("NCHW", "OIHW", "NHWC"))               # (N, OH, OW, C*KH*KW)
    OH, OW = patches.shape[1], patches.shape[2]
    M = n * OH * OW
    patches2d = patches.reshape(M, K)                             # (128, 243)
    # Zero-pad K 243 -> 256.  Kept host-side intentionally: the MXU contraction needs *zero*
    # (not undefined) padding lanes for exactness; fuses with the reshape into one tiny op.
    patches_p = jnp.pad(patches2d, ((0, 0), (0, K_PAD - K)))      # (128, 256)

    out_flat = fused_pallas(patches_p, w_p, b_p)                  # (128, 128)

    # Strip padding, back to NCHW.
    return out_flat[:, :COUT].reshape(n, OH, OW, COUT).transpose(0, 3, 1, 2)


# --------------------------------- reference ---------------------------------
def reference(x, w, b):
    h = jnp.clip(x + 3.0, -3.0, 0.0)
    h = h[:, :, ::SCALE, ::SCALE]
    y = jax.lax.conv_general_dilated(
        h, w, window_strides=(1, 1), padding="VALID",
        dimension_numbers=("NCHW", "OIHW", "NCHW"),
        precision=jax.lax.Precision.HIGHEST)
    y = y + b[None, :, None, None]
    y = jnp.clip(y, 0.0, 6.0)
    return jax.nn.softmax(y, axis=0)


if __name__ == "__main__":
    key = jax.random.PRNGKey(0)
    kx, kw_, kb = jax.random.split(key, 3)
    # H = W = 256 so that 256 * 0.0625 = 16 >= 9 and the 9x9 VALID conv is well defined.
    x = jax.random.normal(kx, (2, 3, 256, 256), dtype=jnp.float32)
    fan_in = CIN * KH * KW
    bound = 1.0 / (fan_in ** 0.5)
    w = jax.random.uniform(kw_, (COUT, CIN, KH, KW), jnp.float32, -bound, bound)
    b = jax.random.uniform(kb, (COUT,), jnp.float32, -bound, bound)

    w_p, b_p = pack_params(w, b)          # constants: packed once, outside the jitted forward

    fwd = jax.jit(model_forward)
    out = fwd(x, w_p, b_p)
    jax.block_until_ready(out)

    ref = reference(x, w, b)
    assert out.shape == (2, 3, 8, 8), out.shape
    max_err = float(jnp.max(jnp.abs(out - ref)))
    assert jnp.allclose(out, ref, atol=1e-5, rtol=1e-5), max_err
    print("KERNEL_OK")
</pallas_src>

<mosaic_0001>
module attributes {stable_mosaic.version = 11 : i64} {
  func.func @fused_kernel(%arg0: memref<128x256xf32, #tpu.memory_space<vmem>>, %arg1: memref<256x128xf32, #tpu.memory_space<vmem>>, %arg2: memref<1x128xf32, #tpu.memory_space<vmem>>, %arg3: memref<128x128xf32, #tpu.memory_space<vmem>>) attributes {dimension_semantics = [], scalar_prefetch = 0 : i64, scratch_operands = 0 : i64, tpu.core_type = #tpu.core_type<tc>} {
    %c0 = arith.constant 0 : index
    %c0_0 = arith.constant 0 : index
    %0 = vector.load %arg0[%c0, %c0_0] : memref<128x256xf32, #tpu.memory_space<vmem>>, vector<128x256xf32>
    %cst = arith.constant 3.000000e+00 : f32
    %1 = vector.broadcast %cst : f32 to vector<128x256xf32>
    %2 = arith.addf %0, %1 : vector<128x256xf32>
    %cst_1 = arith.constant -3.000000e+00 : f32
    %cst_2 = arith.constant 0.000000e+00 : f32
    %3 = vector.broadcast %cst_1 : f32 to vector<128x256xf32>
    %4 = arith.maximumf %3, %2 : vector<128x256xf32>
    %5 = vector.broadcast %cst_2 : f32 to vector<128x256xf32>
    %6 = arith.minimumf %5, %4 : vector<128x256xf32>
    %c0_3 = arith.constant 0 : index
    %c0_4 = arith.constant 0 : index
    %7 = vector.load %arg1[%c0_3, %c0_4] : memref<256x128xf32, #tpu.memory_space<vmem>>, vector<256x128xf32>
    %cst_5 = arith.constant dense<0.000000e+00> : vector<128x128xf32>
    %8 = tpu.matmul %6, %7, %cst_5 {dimension_numbers = #tpu.dot_dimension_numbers<[1], [0], [0], [1], [0, 0, 1, 1], [], []>} : vector<128x256xf32>, vector<256x128xf32>, vector<128x128xf32> -> vector<128x128xf32>
    %c0_6 = arith.constant 0 : index
    %c0_7 = arith.constant 0 : index
    %9 = vector.load %arg2[%c0_6, %c0_7] : memref<1x128xf32, #tpu.memory_space<vmem>>, vector<1x128xf32>
    %10 = vector.broadcast %9 : vector<1x128xf32> to vector<128x128xf32>
    %11 = arith.addf %8, %10 : vector<128x128xf32>
    %cst_8 = arith.constant 0.000000e+00 : f32
    %cst_9 = arith.constant 6.000000e+00 : f32
    %12 = vector.broadcast %cst_8 : f32 to vector<128x128xf32>
    %13 = arith.maximumf %12, %11 : vector<128x128xf32>
    %14 = vector.broadcast %cst_9 : f32 to vector<128x128xf32>
    %15 = arith.minimumf %14, %13 : vector<128x128xf32>
    %16 = vector.extract_strided_slice %15 {offsets = [0, 0], sizes = [64, 128], strides = [1, 1]} : vector<128x128xf32> to vector<64x128xf32>
    %17 = vector.extract_strided_slice %15 {offsets = [64, 0], sizes = [64, 128], strides = [1, 1]} : vector<128x128xf32> to vector<64x128xf32>
    %18 = arith.maximumf %16, %17 : vector<64x128xf32>
    %19 = arith.subf %16, %18 : vector<64x128xf32>
    %20 = math.exp %19 : vector<64x128xf32>
    %21 = arith.subf %17, %18 : vector<64x128xf32>
    %22 = math.exp %21 : vector<64x128xf32>
    %23 = arith.addf %20, %22 : vector<64x128xf32>
    %cst_10 = arith.constant 1.000000e+00 : f32
    %24 = vector.broadcast %cst_10 : f32 to vector<64x128xf32>
    %25 = arith.divf %24, %23 : vector<64x128xf32>
    %26 = arith.mulf %20, %25 : vector<64x128xf32>
    %c0_11 = arith.constant 0 : index
    %c0_12 = arith.constant 0 : index
    %27 = vector.load %arg3[%c0_11, %c0_12] : memref<128x128xf32, #tpu.memory_space<vmem>>, vector<64x128xf32>
    tpu.vector_store %arg3[%c0_11, %c0_12], %26 {strides = array<i32>} : memref<128x128xf32, #tpu.memory_space<vmem>>, vector<64x128xf32>,
    %28 = arith.mulf %22, %25 : vector<64x128xf32>
    %c64 = arith.constant 64 : index
    %c0_13 = arith.constant 0 : index
    %29 = vector.load %arg3[%c64, %c0_13] : memref<128x128xf32, #tpu.memory_space<vmem>>, vector<64x128xf32>
    tpu.vector_store %arg3[%c64, %c0_13], %28 {strides = array<i32>} : memref<128x128xf32, #tpu.memory_space<vmem>>, vector<64x128xf32>,
    return
  }
}

</mosaic_0001>

<llo_original>
// kernel: model_forward.1
$region0: #{model_forward.1}
  #allocation0 [shape = 'u32[]', space=smem, size = 0x4, offset = 0x4, fixed_abs, tag = 'smem constant byte address 0x4 - core index']
  #allocation1 [shape = 'u32[72,128]{1,0:T(1,128)}', space=vmem, size = 0x9000, scoped, tag = 'internal scratch']
  %s0 = inlined_call_operand.vmem [shape: f32[128,256], index: 0, kind: input, shape index: {}]
  %s1 = inlined_call_operand.vmem [shape: f32[256,128], index: 1, kind: input, shape index: {}]
  %s2 = inlined_call_operand.vmem [shape: f32[1,128], index: 2, kind: input, shape index: {}]
  %s3 = inlined_call_operand.vmem [shape: f32[128,128], index: 3, kind: output, shape index: {}]
  %s4 = sld [smem:[#allocation0]]
  $region22: #{model_forward.1} parent=0
    _
  %s6 = ssub.s32 1, %s4
  %s7 = scalar_select 0, %s6, %s4
  // Predicated region
  $region2: #{model_forward.1} parent=0 // pred_check
    _
  $region3: #{model_forward.1} parent=0 // pred_check_branch
    %9 = sbr.rel (0) target = $region5
  $region4: #{model_forward.1} parent=0 // pred_region
    _
  $region5: #{model_forward.1} parent=0 // pred_fallthru
    _
  // Predicated region
  $region6: #{model_forward.1} parent=0 // pred_check
    _
  $region7: #{model_forward.1} parent=0 // pred_check_branch
    %11 = sbr.rel (0) target = $region9
  $region8: #{model_forward.1} parent=0 // pred_region
    _
  $region9: #{model_forward.1} parent=0 // pred_fallthru
    _
  // Predicated region
  $region10: #{model_forward.1} parent=0 // pred_check
    _
  $region11: #{model_forward.1} parent=0 // pred_check_branch
    %13 = sbr.rel (0) target = $region13
  $region12: #{model_forward.1} parent=0 // pred_region
    _
  $region13: #{model_forward.1} parent=0 // pred_fallthru
    _
  %v14 = vld [vmem:[%s0] sm:$0xff]
  %v15 = vld [vmem:[%s0 + $0x8] sm:$0xff]
  %v16 = vld [vmem:[%s0 + $0x10] sm:$0xff]
  %v17 = vld [vmem:[%s0 + $0x18] sm:$0xff]
  %v18 = vld [vmem:[%s0 + $0x20] sm:$0xff]
  %v19 = vld [vmem:[%s0 + $0x28] sm:$0xff]
  %v20 = vld [vmem:[%s0 + $0x30] sm:$0xff]
  %v21 = vld [vmem:[%s0 + $0x38] sm:$0xff]
  %v22 = vld [vmem:[%s0 + $0x40] sm:$0xff]
  %v23 = vld [vmem:[%s0 + $0x48] sm:$0xff]
  %v24 = vld [vmem:[%s0 + $0x50] sm:$0xff]
  %v25 = vld [vmem:[%s0 + $0x58] sm:$0xff]
  %v26 = vld [vmem:[%s0 + $0x60] sm:$0xff]
  %v27 = vld [vmem:[%s0 + $0x68] sm:$0xff]
  %v28 = vld [vmem:[%s0 + $0x70] sm:$0xff]
  %v29 = vld [vmem:[%s0 + $0x78] sm:$0xff]
  %v30 = vld [vmem:[%s0 + $0x80] sm:$0xff]
  %v31 = vld [vmem:[%s0 + $0x88] sm:$0xff]
  %v32 = vld [vmem:[%s0 + $0x90] sm:$0xff]
  %v33 = vld [vmem:[%s0 + $0x98] sm:$0xff]
  %v34 = vld [vmem:[%s0 + $0xa0] sm:$0xff]
  %v35 = vld [vmem:[%s0 + $0xa8] sm:$0xff]
  %v36 = vld [vmem:[%s0 + $0xb0] sm:$0xff]
  %v37 = vld [vmem:[%s0 + $0xb8] sm:$0xff]
  %v38 = vld [vmem:[%s0 + $0xc0] sm:$0xff]
  %v39 = vld [vmem:[%s0 + $0xc8] sm:$0xff]
  %v40 = vld [vmem:[%s0 + $0xd0] sm:$0xff]
  %v41 = vld [vmem:[%s0 + $0xd8] sm:$0xff]
  %v42 = vld [vmem:[%s0 + $0xe0] sm:$0xff]
  %v43 = vld [vmem:[%s0 + $0xe8] sm:$0xff]
  %v44 = vld [vmem:[%s0 + $0xf0] sm:$0xff]
  %v45 = vld [vmem:[%s0 + $0xf8] sm:$0xff]
  %v46 = vadd.f32 %v14, 3.0
  %v47 = vadd.f32 %v15, 3.0
  %v48 = vadd.f32 %v16, 3.0
  %v49 = vadd.f32 %v17, 3.0
  %v50 = vadd.f32 %v18, 3.0
  %v51 = vadd.f32 %v19, 3.0
  %v52 = vadd.f32 %v20, 3.0
  %v53 = vadd.f32 %v21, 3.0
  %v54 = vadd.f32 %v22, 3.0
  %v55 = vadd.f32 %v23, 3.0
  %v56 = vadd.f32 %v24, 3.0
  %v57 = vadd.f32 %v25, 3.0
  %v58 = vadd.f32 %v26, 3.0
  %v59 = vadd.f32 %v27, 3.0
  %v60 = vadd.f32 %v28, 3.0
  %v61 = vadd.f32 %v29, 3.0
  %v62 = vadd.f32 %v30, 3.0
  %v63 = vadd.f32 %v31, 3.0
  %v64 = vadd.f32 %v32, 3.0
  %v65 = vadd.f32 %v33, 3.0
  %v66 = vadd.f32 %v34, 3.0
  %v67 = vadd.f32 %v35, 3.0
  %v68 = vadd.f32 %v36, 3.0
  %v69 = vadd.f32 %v37, 3.0
  %v70 = vadd.f32 %v38, 3.0
  %v71 = vadd.f32 %v39, 3.0
  %v72 = vadd.f32 %v40, 3.0
  %v73 = vadd.f32 %v41, 3.0
  %v74 = vadd.f32 %v42, 3.0
  %v75 = vadd.f32 %v43, 3.0
  %v76 = vadd.f32 %v44, 3.0
  %v77 = vadd.f32 %v45, 3.0
  %v78 = vmax.f32 %v46, -3.0
  %v79 = vmax.f32 %v47, -3.0
  %v80 = vmax.f32 %v48, -3.0
  %v81 = vmax.f32 %v49, -3.0
  %v82 = vmax.f32 %v50, -3.0
  %v83 = vmax.f32 %v51, -3.0
  %v84 = vmax.f32 %v52, -3.0
  %v85 = vmax.f32 %v53, -3.0
  %v86 = vmax.f32 %v54, -3.0
  %v87 = vmax.f32 %v55, -3.0
  %v88 = vmax.f32 %v56, -3.0
  %v89 = vmax.f32 %v57, -3.0
  %v90 = vmax.f32 %v58, -3.0
  %v91 = vmax.f32 %v59, -3.0
  %v92 = vmax.f32 %v60, -3.0
  %v93 = vmax.f32 %v61, -3.0
  %v94 = vmax.f32 %v62, -3.0
  %v95 = vmax.f32 %v63, -3.0
  %v96 = vmax.f32 %v64, -3.0
  %v97 = vmax.f32 %v65, -3.0
  %v98 = vmax.f32 %v66, -3.0
  %v99 = vmax.f32 %v67, -3.0
  %v100 = vmax.f32 %v68, -3.0
  %v101 = vmax.f32 %v69, -3.0
  %v102 = vmax.f32 %v70, -3.0
  %v103 = vmax.f32 %v71, -3.0
  %v104 = vmax.f32 %v72, -3.0
  %v105 = vmax.f32 %v73, -3.0
  %v106 = vmax.f32 %v74, -3.0
  %v107 = vmax.f32 %v75, -3.0
  %v108 = vmax.f32 %v76, -3.0
  %v109 = vmax.f32 %v77, -3.0
  %v110 = vmin.f32 %v78, 0.0
  %v111 = vmin.f32 %v79, 0.0
  %v112 = vmin.f32 %v80, 0.0
  %v113 = vmin.f32 %v81, 0.0
  %v114 = vmin.f32 %v82, 0.0
  %v115 = vmin.f32 %v83, 0.0
  %v116 = vmin.f32 %v84, 0.0
  %v117 = vmin.f32 %v85, 0.0
  %v118 = vmin.f32 %v86, 0.0
  %v119 = vmin.f32 %v87, 0.0
  %v120 = vmin.f32 %v88, 0.0
  %v121 = vmin.f32 %v89, 0.0
  %v122 = vmin.f32 %v90, 0.0
  %v123 = vmin.f32 %v91, 0.0
  %v124 = vmin.f32 %v92, 0.0
  %v125 = vmin.f32 %v93, 0.0
  %v126 = vmin.f32 %v94, 0.0
  %v127 = vmin.f32 %v95, 0.0
  %v128 = vmin.f32 %v96, 0.0
  %v129 = vmin.f32 %v97, 0.0
  %v130 = vmin.f32 %v98, 0.0
  %v131 = vmin.f32 %v99, 0.0
  %v132 = vmin.f32 %v100, 0.0
  %v133 = vmin.f32 %v101, 0.0
  %v134 = vmin.f32 %v102, 0.0
  %v135 = vmin.f32 %v103, 0.0
  %v136 = vmin.f32 %v104, 0.0
  %v137 = vmin.f32 %v105, 0.0
  %v138 = vmin.f32 %v106, 0.0
  %v139 = vmin.f32 %v107, 0.0
  %v140 = vmin.f32 %v108, 0.0
  %v141 = vmin.f32 %v109, 0.0
  %v142 = vld [vmem:[%s1] sm:$0xff]
  %v143 = vld [vmem:[%s1 + $0x8] sm:$0xff]
  %v144 = vld [vmem:[%s1 + $0x10] sm:$0xff]
  %v145 = vld [vmem:[%s1 + $0x18] sm:$0xff]
  %v146 = vld [vmem:[%s1 + $0x20] sm:$0xff]
  %v147 = vld [vmem:[%s1 + $0x28] sm:$0xff]
  %v148 = vld [vmem:[%s1 + $0x30] sm:$0xff]
  %v149 = vld [vmem:[%s1 + $0x38] sm:$0xff]
  %v150 = vld [vmem:[%s1 + $0x40] sm:$0xff]
  %v151 = vld [vmem:[%s1 + $0x48] sm:$0xff]
  %v152 = vld [vmem:[%s1 + $0x50] sm:$0xff]
  %v153 = vld [vmem:[%s1 + $0x58] sm:$0xff]
  %v154 = vld [vmem:[%s1 + $0x60] sm:$0xff]
  %v155 = vld [vmem:[%s1 + $0x68] sm:$0xff]
  %v156 = vld [vmem:[%s1 + $0x70] sm:$0xff]
  %v157 = vld [vmem:[%s1 + $0x78] sm:$0xff]
  %v158 = vld [vmem:[%s1 + $0x80] sm:$0xff]
  %v159 = vld [vmem:[%s1 + $0x88] sm:$0xff]
  %v160 = vld [vmem:[%s1 + $0x90] sm:$0xff]
  %v161 = vld [vmem:[%s1 + $0x98] sm:$0xff]
  %v162 = vld [vmem:[%s1 + $0xa0] sm:$0xff]
  %v163 = vld [vmem:[%s1 + $0xa8] sm:$0xff]
  %v164 = vld [vmem:[%s1 + $0xb0] sm:$0xff]
  %v165 = vld [vmem:[%s1 + $0xb8] sm:$0xff]
  %v166 = vld [vmem:[%s1 + $0xc0] sm:$0xff]
  %v167 = vld [vmem:[%s1 + $0xc8] sm:$0xff]
  %v168 = vld [vmem:[%s1 + $0xd0] sm:$0xff]
  %v169 = vld [vmem:[%s1 + $0xd8] sm:$0xff]
  %v170 = vld [vmem:[%s1 + $0xe0] sm:$0xff]
  %v171 = vld [vmem:[%s1 + $0xe8] sm:$0xff]
  %v172 = vld [vmem:[%s1 + $0xf0] sm:$0xff]
  %v173 = vld [vmem:[%s1 + $0xf8] sm:$0xff]
  %v174 = vld [vmem:[%s2] sm:$0x1]
  %v176 = vperm.slane %v174, 0
  %178 = vmatpush.msra.mxu0 %v157
  %179 = vmatpush.msra.mxu0 %v156
  %180 = vmatpush.msra.mxu0 %v155
  %181 = vmatpush.msra.mxu0 %v154
  %182 = vmatpush.msra.mxu0 %v153
  %183 = vmatpush.msra.mxu0 %v152
  %184 = vmatpush.msra.mxu0 %v151
  %185 = vmatpush.msra.mxu0 %v150
  %186 = vmatpush.msra.mxu0 %v149
  %187 = vmatpush.msra.mxu0 %v148
  %188 = vmatpush.msra.mxu0 %v147
  %189 = vmatpush.msra.mxu0 %v146
  %190 = vmatpush.msra.mxu0 %v145
  %191 = vmatpush.msra.mxu0 %v144
  %192 = vmatpush.msra.mxu0 %v143
  %193 = vmatpush.msra.mxu0 %v142
  %194 = vmatmul.f32.gmra.mxu0 %v110
  %v195 = vpop.f32.mrf.mxu0
  %v196 = vadd.f32 %v176, %v195
  %197 = vmatmul.f32.gmra.mxu0 %v112
  %v198 = vpop.f32.mrf.mxu0
  %v199 = vadd.f32 %v176, %v198
  %200 = vmatmul.f32.gmra.mxu0 %v114
  %v201 = vpop.f32.mrf.mxu0
  %v202 = vadd.f32 %v176, %v201
  %203 = vmatmul.f32.gmra.mxu0 %v116
  %v204 = vpop.f32.mrf.mxu0
  %v205 = vadd.f32 %v176, %v204
  %206 = vmatmul.f32.gmra.mxu0 %v118
  %v207 = vpop.f32.mrf.mxu0
  %v208 = vadd.f32 %v176, %v207
  %209 = vmatmul.f32.gmra.mxu0 %v120
  %v210 = vpop.f32.mrf.mxu0
  %v211 = vadd.f32 %v176, %v210
  %212 = vmatmul.f32.gmra.mxu0 %v122
  %v213 = vpop.f32.mrf.mxu0
  %v214 = vadd.f32 %v176, %v213
  %215 = vmatmul.f32.gmra.mxu0 %v124
  %v216 = vpop.f32.mrf.mxu0
  %v217 = vadd.f32 %v176, %v216
  %218 = vmatmul.f32.gmra.mxu0 %v126
  %v219 = vpop.f32.mrf.mxu0
  %v220 = vadd.f32 %v176, %v219
  %221 = vmatmul.f32.gmra.mxu0 %v128
  %v222 = vpop.f32.mrf.mxu0
  %v223 = vadd.f32 %v176, %v222
  %224 = vmatmul.f32.gmra.mxu0 %v130
  %v225 = vpop.f32.mrf.mxu0
  %v226 = vadd.f32 %v176, %v225
  %227 = vmatmul.f32.gmra.mxu0 %v132
  %v228 = vpop.f32.mrf.mxu0
  %v229 = vadd.f32 %v176, %v228
  %230 = vmatmul.f32.gmra.mxu0 %v134
  %v231 = vpop.f32.mrf.mxu0
  %v232 = vadd.f32 %v176, %v231
  %233 = vmatmul.f32.gmra.mxu0 %v136
  %v234 = vpop.f32.mrf.mxu0
  %v235 = vadd.f32 %v176, %v234
  %236 = vmatmul.f32.gmra.mxu0 %v138
  %v237 = vpop.f32.mrf.mxu0
  %v238 = vadd.f32 %v176, %v237
  %239 = vmatmul.f32.gmra.mxu0 %v140
  %v240 = vpop.f32.mrf.mxu0
  %v241 = vadd.f32 %v176, %v240
  %242 = vdwg.mxu0
  %243 = vmatpush.msra.mxu0 %v173
  %244 = vmatpush.msra.mxu0 %v172
  %245 = vmatpush.msra.mxu0 %v171
  %246 = vmatpush.msra.mxu0 %v170
  %247 = vmatpush.msra.mxu0 %v169
  %248 = vmatpush.msra.mxu0 %v168
  %249 = vmatpush.msra.mxu0 %v167
  %250 = vmatpush.msra.mxu0 %v166
  %251 = vmatpush.msra.mxu0 %v165
  %252 = vmatpush.msra.mxu0 %v164
  %253 = vmatpush.msra.mxu0 %v163
  %254 = vmatpush.msra.mxu0 %v162
  %255 = vmatpush.msra.mxu0 %v161
  %256 = vmatpush.msra.mxu0 %v160
  %257 = vmatpush.msra.mxu0 %v159
  %258 = vmatpush.msra.mxu0 %v158
  %259 = vmatmul.f32.gmra.mxu0 %v111
  %v260 = vpop.f32.mrf.mxu0
  %v261 = vadd.f32 %v196, %v260
  %262 = vmatmul.f32.gmra.mxu0 %v113
  %v263 = vpop.f32.mrf.mxu0
  %v264 = vadd.f32 %v199, %v263
  %265 = vmatmul.f32.gmra.mxu0 %v115
  %v266 = vpop.f32.mrf.mxu0
  %v267 = vadd.f32 %v202, %v266
  %268 = vmatmul.f32.gmra.mxu0 %v117
  %v269 = vpop.f32.mrf.mxu0
  %v270 = vadd.f32 %v205, %v269
  %271 = vmatmul.f32.gmra.mxu0 %v119
  %v272 = vpop.f32.mrf.mxu0
  %v273 = vadd.f32 %v208, %v272
  %274 = vmatmul.f32.gmra.mxu0 %v121
  %v275 = vpop.f32.mrf.mxu0
  %v276 = vadd.f32 %v211, %v275
  %277 = vmatmul.f32.gmra.mxu0 %v123
  %v278 = vpop.f32.mrf.mxu0
  %v279 = vadd.f32 %v214, %v278
  %280 = vmatmul.f32.gmra.mxu0 %v125
  %v281 = vpop.f32.mrf.mxu0
  %v282 = vadd.f32 %v217, %v281
  %283 = vmatmul.f32.gmra.mxu0 %v127
  %v284 = vpop.f32.mrf.mxu0
  %v285 = vadd.f32 %v220, %v284
  %286 = vmatmul.f32.gmra.mxu0 %v129
  %v287 = vpop.f32.mrf.mxu0
  %v288 = vadd.f32 %v223, %v287
  %289 = vmatmul.f32.gmra.mxu0 %v131
  %v290 = vpop.f32.mrf.mxu0
  %v291 = vadd.f32 %v226, %v290
  %292 = vmatmul.f32.gmra.mxu0 %v133
  %v293 = vpop.f32.mrf.mxu0
  %v294 = vadd.f32 %v229, %v293
  %295 = vmatmul.f32.gmra.mxu0 %v135
  %v296 = vpop.f32.mrf.mxu0
  %v297 = vadd.f32 %v232, %v296
  %298 = vmatmul.f32.gmra.mxu0 %v137
  %v299 = vpop.f32.mrf.mxu0
  %v300 = vadd.f32 %v235, %v299
  %301 = vmatmul.f32.gmra.mxu0 %v139
  %v302 = vpop.f32.mrf.mxu0
  %v303 = vadd.f32 %v238, %v302
  %304 = vmatmul.f32.gmra.mxu0 %v141
  %v305 = vpop.f32.mrf.mxu0
  %v306 = vadd.f32 %v241, %v305
  %307 = vdwg.mxu0
  %v308 = vmax.f32 %v261, 0.0
  %v309 = vmax.f32 %v264, 0.0
  %v310 = vmax.f32 %v267, 0.0
  %v311 = vmax.f32 %v270, 0.0
  %v312 = vmax.f32 %v273, 0.0
  %v313 = vmax.f32 %v276, 0.0
  %v314 = vmax.f32 %v279, 0.0
  %v315 = vmax.f32 %v282, 0.0
  %v316 = vmax.f32 %v285, 0.0
  %v317 = vmax.f32 %v288, 0.0
  %v318 = vmax.f32 %v291, 0.0
  %v319 = vmax.f32 %v294, 0.0
  %v320 = vmax.f32 %v297, 0.0
  %v321 = vmax.f32 %v300, 0.0
  %v322 = vmax.f32 %v303, 0.0
  %v323 = vmax.f32 %v306, 0.0
  %v324 = vmin.f32 %v308, 6.0
  %v325 = vmin.f32 %v309, 6.0
  %v326 = vmin.f32 %v310, 6.0
  %v327 = vmin.f32 %v311, 6.0
  %v328 = vmin.f32 %v312, 6.0
  %v329 = vmin.f32 %v313, 6.0
  %v330 = vmin.f32 %v314, 6.0
  %v331 = vmin.f32 %v315, 6.0
  %v332 = vmin.f32 %v316, 6.0
  %v333 = vmin.f32 %v317, 6.0
  %v334 = vmin.f32 %v318, 6.0
  %v335 = vmin.f32 %v319, 6.0
  %v336 = vmin.f32 %v320, 6.0
  %v337 = vmin.f32 %v321, 6.0
  %v338 = vmin.f32 %v322, 6.0
  %v339 = vmin.f32 %v323, 6.0
  %v340 = vmax.f32 %v324, %v332
  %v341 = vmax.f32 %v325, %v333
  %v342 = vmax.f32 %v326, %v334
  %v343 = vmax.f32 %v327, %v335
  %v344 = vmax.f32 %v328, %v336
  %v345 = vmax.f32 %v329, %v337
  %v346 = vmax.f32 %v330, %v338
  %v347 = vmax.f32 %v331, %v339
  %v348 = vsub.f32 %v324, %v340
  %v349 = vsub.f32 %v325, %v341
  %v350 = vsub.f32 %v326, %v342
  %v351 = vsub.f32 %v327, %v343
  %v352 = vsub.f32 %v328, %v344
  %v353 = vsub.f32 %v329, %v345
  %v354 = vsub.f32 %v330, %v346
  %v355 = vsub.f32 %v331, %v347
  %v356 = vmul.f32 %v348, 1.442695
  %v357 = vpow.pop %v356
  %v358 = vmul.f32 %v349, 1.442695
  %v359 = vpow.pop %v358
  %v360 = vmul.f32 %v350, 1.442695
  %v361 = vpow.pop %v360
  %v362 = vmul.f32 %v351, 1.442695
  %v363 = vpow.pop %v362
  %v364 = vmul.f32 %v352, 1.442695
  %v365 = vpow.pop %v364
  %v366 = vmul.f32 %v353, 1.442695
  %v367 = vpow.pop %v366
  %v368 = vmul.f32 %v354, 1.442695
  %v369 = vpow.pop %v368
  %v370 = vmul.f32 %v355, 1.442695
  %v371 = vpow.pop %v370
  %v372 = vsub.f32 %v332, %v340
  %v373 = vsub.f32 %v333, %v341
  %v374 = vsub.f32 %v334, %v342
  %v375 = vsub.f32 %v335, %v343
  %v376 = vsub.f32 %v336, %v344
  %v377 = vsub.f32 %v337, %v345
  %v378 = vsub.f32 %v338, %v346
  %v379 = vsub.f32 %v339, %v347
  %v380 = vmul.f32 %v372, 1.442695
  %v381 = vpow.pop %v380
  %v382 = vmul.f32 %v373, 1.442695
  %v383 = vpow.pop %v382
  %v384 = vmul.f32 %v374, 1.442695
  %v385 = vpow.pop %v384
  %v386 = vmul.f32 %v375, 1.442695
  %v387 = vpow.pop %v386
  %v388 = vmul.f32 %v376, 1.442695
  %v389 = vpow.pop %v388
  %v390 = vmul.f32 %v377, 1.442695
  %v391 = vpow.pop %v390
  %v392 = vmul.f32 %v378, 1.442695
  %v393 = vpow.pop %v392
  %v394 = vmul.f32 %v379, 1.442695
  %v395 = vpow.pop %v394
  %v396 = vadd.f32 %v357, %v381
  %v397 = vadd.f32 %v359, %v383
  %v398 = vadd.f32 %v361, %v385
  %v399 = vadd.f32 %v363, %v387
  %v400 = vadd.f32 %v365, %v389
  %v401 = vadd.f32 %v367, %v391
  %v402 = vadd.f32 %v369, %v393
  %v403 = vadd.f32 %v371, %v395
  %v404 = vrcp.pop %v396
  %v405 = vmul.f32 %v396, %v404
  %v406 = vsub.f32 1.0, %v405
  %v407 = vmul.f32 %v404, %v406
  %v408 = vadd.f32 %v404, %v407
  %vm409 = vweird.f32 %v396
  %vm410 = vweird.f32 %v404
  %vm411 = vmor %vm409, %vm410
  %v412 = vsel %vm411, %v404, %v408
  %v413 = vand.u32 2147483647, %v396
  %vm414 = vcmp.eq.f32.partialorder %v413, 8.507059e+37
  %v415 = vand.u32 %v396, 2147483648
  %v416 = vor.u32 1.1754944e-38, %v415
  %v417 = vsel %vm414, %v416, %v412
  %v418 = vmul.f32 1.0, %v417
  %v419 = vrcp.pop %v397
  %v420 = vmul.f32 %v397, %v419
  %v421 = vsub.f32 1.0, %v420
  %v422 = vmul.f32 %v419, %v421
  %v423 = vadd.f32 %v419, %v422
  %vm424 = vweird.f32 %v397
  %vm425 = vweird.f32 %v419
  %vm426 = vmor %vm424, %vm425
  %v427 = vsel %vm426, %v419, %v423
  %v428 = vand.u32 2147483647, %v397
  %vm429 = vcmp.eq.f32.partialorder %v428, 8.507059e+37
  %v430 = vand.u32 %v397, 2147483648
  %v431 = vor.u32 1.1754944e-38, %v430
  %v432 = vsel %vm429, %v431, %v427
  %v433 = vmul.f32 1.0, %v432
  %v434 = vrcp.pop %v398
  %v435 = vmul.f32 %v398, %v434
  %v436 = vsub.f32 1.0, %v435
  %v437 = vmul.f32 %v434, %v436
  %v438 = vadd.f32 %v434, %v437
  %vm439 = vweird.f32 %v398
  %vm440 = vweird.f32 %v434
  %vm441 = vmor %vm439, %vm440
  %v442 = vsel %vm441, %v434, %v438
  %v443 = vand.u32 2147483647, %v398
  %vm444 = vcmp.eq.f32.partialorder %v443, 8.507059e+37
  %v445 = vand.u32 %v398, 2147483648
  %v446 = vor.u32 1.1754944e-38, %v445
  %v447 = vsel %vm444, %v446, %v442
  %v448 = vmul.f32 1.0, %v447
  %v449 = vrcp.pop %v399
  %v450 = vmul.f32 %v399, %v449
  %v451 = vsub.f32 1.0, %v450
  %v452 = vmul.f32 %v449, %v451
  %v453 = vadd.f32 %v449, %v452
  %vm454 = vweird.f32 %v399
  %vm455 = vweird.f32 %v449
  %vm456 = vmor %vm454, %vm455
  %v457 = vsel %vm456, %v449, %v453
  %v458 = vand.u32 2147483647, %v399
  %vm459 = vcmp.eq.f32.partialorder %v458, 8.507059e+37
  %v460 = vand.u32 %v399, 2147483648
  %v461 = vor.u32 1.1754944e-38, %v460
  %v462 = vsel %vm459, %v461, %v457
  %v463 = vmul.f32 1.0, %v462
  %v464 = vrcp.pop %v400
  %v465 = vmul.f32 %v400, %v464
  %v466 = vsub.f32 1.0, %v465
  %v467 = vmul.f32 %v464, %v466
  %v468 = vadd.f32 %v464, %v467
  %vm469 = vweird.f32 %v400
  %vm470 = vweird.f32 %v464
  %vm471 = vmor %vm469, %vm470
  %v472 = vsel %vm471, %v464, %v468
  %v473 = vand.u32 2147483647, %v400
  %vm474 = vcmp.eq.f32.partialorder %v473, 8.507059e+37
  %v475 = vand.u32 %v400, 2147483648
  %v476 = vor.u32 1.1754944e-38, %v475
  %v477 = vsel %vm474, %v476, %v472
  %v478 = vmul.f32 1.0, %v477
  %v479 = vrcp.pop %v401
  %v480 = vmul.f32 %v401, %v479
  %v481 = vsub.f32 1.0, %v480
  %v482 = vmul.f32 %v479, %v481
  %v483 = vadd.f32 %v479, %v482
  %vm484 = vweird.f32 %v401
  %vm485 = vweird.f32 %v479
  %vm486 = vmor %vm484, %vm485
  %v487 = vsel %vm486, %v479, %v483
  %v488 = vand.u32 2147483647, %v401
  %vm489 = vcmp.eq.f32.partialorder %v488, 8.507059e+37
  %v490 = vand.u32 %v401, 2147483648
  %v491 = vor.u32 1.1754944e-38, %v490
  %v492 = vsel %vm489, %v491, %v487
  %v493 = vmul.f32 1.0, %v492
  %v494 = vrcp.pop %v402
  %v495 = vmul.f32 %v402, %v494
  %v496 = vsub.f32 1.0, %v495
  %v497 = vmul.f32 %v494, %v496
  %v498 = vadd.f32 %v494, %v497
  %vm499 = vweird.f32 %v402
  %vm500 = vweird.f32 %v494
  %vm501 = vmor %vm499, %vm500
  %v502 = vsel %vm501, %v494, %v498
  %v503 = vand.u32 2147483647, %v402
  %vm504 = vcmp.eq.f32.partialorder %v503, 8.507059e+37
  %v505 = vand.u32 %v402, 2147483648
  %v506 = vor.u32 1.1754944e-38, %v505
  %v507 = vsel %vm504, %v506, %v502
  %v508 = vmul.f32 1.0, %v507
  %v509 = vrcp.pop %v403
  %v510 = vmul.f32 %v403, %v509
  %v511 = vsub.f32 1.0, %v510
  %v512 = vmul.f32 %v509, %v511
  %v513 = vadd.f32 %v509, %v512
  %vm514 = vweird.f32 %v403
  %vm515 = vweird.f32 %v509
  %vm516 = vmor %vm514, %vm515
  %v517 = vsel %vm516, %v509, %v513
  %v518 = vand.u32 2147483647, %v403
  %vm519 = vcmp.eq.f32.partialorder %v518, 8.507059e+37
  %v520 = vand.u32 %v403, 2147483648
  %v521 = vor.u32 1.1754944e-38, %v520
  %v522 = vsel %vm519, %v521, %v517
  %v523 = vmul.f32 1.0, %v522
  %v524 = vmul.f32 %v357, %v418
  %v525 = vmul.f32 %v359, %v433
  %v526 = vmul.f32 %v361, %v448
  %v527 = vmul.f32 %v363, %v463
  %v528 = vmul.f32 %v365, %v478
  %v529 = vmul.f32 %v367, %v493
  %v530 = vmul.f32 %v369, %v508
  %v531 = vmul.f32 %v371, %v523
  %532 = vst [vmem:[%s3] sm:$0xff] %v524
  %533 = vst [vmem:[%s3 + $0x8] sm:$0xff] %v525
  %534 = vst [vmem:[%s3 + $0x10] sm:$0xff] %v526
  %535 = vst [vmem:[%s3 + $0x18] sm:$0xff] %v527
  %536 = vst [vmem:[%s3 + $0x20] sm:$0xff] %v528
  %537 = vst [vmem:[%s3 + $0x28] sm:$0xff] %v529
  %538 = vst [vmem:[%s3 + $0x30] sm:$0xff] %v530
  %539 = vst [vmem:[%s3 + $0x38] sm:$0xff] %v531
  %v540 = vmul.f32 %v381, %v418
  %v541 = vmul.f32 %v383, %v433
  %v542 = vmul.f32 %v385, %v448
  %v543 = vmul.f32 %v387, %v463
  %v544 = vmul.f32 %v389, %v478
  %v545 = vmul.f32 %v391, %v493
  %v546 = vmul.f32 %v393, %v508
  %v547 = vmul.f32 %v395, %v523
  %548 = vst [vmem:[%s3 + $0x40] sm:$0xff] %v540
  %549 = vst [vmem:[%s3 + $0x48] sm:$0xff] %v541
  %550 = vst [vmem:[%s3 + $0x50] sm:$0xff] %v542
  %551 = vst [vmem:[%s3 + $0x58] sm:$0xff] %v543
  %552 = vst [vmem:[%s3 + $0x60] sm:$0xff] %v544
  %553 = vst [vmem:[%s3 + $0x68] sm:$0xff] %v545
  %554 = vst [vmem:[%s3 + $0x70] sm:$0xff] %v546
  %555 = vst [vmem:[%s3 + $0x78] sm:$0xff] %v547
  // Predicated region
  $region14: #{model_forward.1} parent=0 // pred_check
    _
  $region15: #{model_forward.1} parent=0 // pred_check_branch
    %557 = sbr.rel (0) target = $region17
  $region16: #{model_forward.1} parent=0 // pred_region
    _
  $region17: #{model_forward.1} parent=0 // pred_fallthru
    _
  // Predicated region
  $region18: #{model_forward.1} parent=0 // pred_check
    _
  $region19: #{model_forward.1} parent=0 // pred_check_branch
    %559 = sbr.rel (0) target = $region21
  $region20: #{model_forward.1} parent=0 // pred_region
    _
  $region21: #{model_forward.1} parent=0 // pred_fallthru
    _

</llo_original>
